<compile_context>
chip_gen: v7x
topology: tpu7x:2x2x1
jax: 0.10.0
libtpu: 0.0.40
codegen_flags: <defaults>
</compile_context>

<pallas_src>
import functools

import jax
import jax.numpy as jnp
from jax.experimental import pallas as pl
from jax.experimental.pallas import tpu as pltpu


def _round_up(v: int, m: int) -> int:
    return ((v + m - 1) // m) * m


def _cdiv(a: int, b: int) -> int:
    return (a + b - 1) // b


def mlp_kernel(x_ref, w1_ref, b1_ref, w2_ref, b2_ref, w3_ref, b3_ref, o_ref):
    # Hoist bias loads (f32, (1, N) -> broadcasts along sublanes on the VPU).
    b1 = b1_ref[...]
    b2 = b2_ref[...]
    b3 = b3_ref[...]

    # In-kernel cast of the activation tile (x arrives f32, true width).
    x = x_ref[...].astype(jnp.bfloat16)

    # fc1 + ReLU   (Dropout1 = identity at eval)
    h1 = jnp.dot(x, w1_ref[...], preferred_element_type=jnp.float32)
    h1 = jnp.maximum(h1 + b1, 0.0)

    # fc2 + ReLU   (Dropout2 = identity at eval)
    h2 = jnp.dot(h1.astype(jnp.bfloat16), w2_ref[...],
                 preferred_element_type=jnp.float32)
    h2 = jnp.maximum(h2 + b2, 0.0)

    # fc3
    out = jnp.dot(h2.astype(jnp.bfloat16), w3_ref[...],
                  preferred_element_type=jnp.float32)
    o_ref[...] = (out + b3).astype(o_ref.dtype)


def pack_params(w1, b1, w2, b2, w3, b3):
    """One-time (model-load) padding + bf16 cast of the weights.

    Weights stored as (in, out) (transposed vs nn.Linear's (out, in)).
    Output feature dims are padded to multiples of 128; w1's input dim is NOT
    padded (x keeps its true feature width). Zero-padding keeps the math
    exact: padded h1/h2 columns are ReLU(0)=0 and the corresponding zeroed
    rows of the next weight contribute 0.
    """
    d_in, h1 = w1.shape
    h2 = w2.shape[1]
    n_cls = w3.shape[1]
    H1 = _round_up(h1, 128)
    H2 = _round_up(h2, 128)
    C = _round_up(n_cls, 128)

    def pad2(a, r, c):
        return jnp.pad(a, ((0, r - a.shape[0]), (0, c - a.shape[1])))

    w1p = pad2(w1, d_in, H1).astype(jnp.bfloat16)
    w2p = pad2(w2, H1, H2).astype(jnp.bfloat16)
    w3p = pad2(w3, H2, C).astype(jnp.bfloat16)
    b1p = pad2(b1.reshape(1, -1), 1, H1).astype(jnp.float32)
    b2p = pad2(b2.reshape(1, -1), 1, H2).astype(jnp.float32)
    b3p = pad2(b3.reshape(1, -1), 1, C).astype(jnp.float32)
    return (w1p, b1p, w2p, b2p, w3p, b3p)


@functools.partial(jax.jit, static_argnames=("num_classes", "tile_b"))
def neural_net_forward(x, w1p, b1p, w2p, b2p, w3p, b3p, *,
                       num_classes: int, tile_b: int = 512):
    """x: (B, input_size) f32; packed params from `pack_params`.

    Returns (B, num_classes) float32, identical semantics to the PyTorch
    module in eval mode.
    """
    B, d_in = x.shape
    H1 = w1p.shape[1]
    H2 = w2p.shape[1]
    C = w3p.shape[1]

    # ---- batch tiling -------------------------------------------------------
    # Guard: tile must be a multiple of 16 (bf16 sublane packing), >= 16.
    tile_cap = max(16, _round_up(int(tile_b), 16))
    n_tiles = max(1, _cdiv(B, tile_cap))
    # Force >= 2 grid steps when there is enough work so v7x's second
    # TensorCore isn't idle (harmless on single-TC v5e/v6e).
    if n_tiles == 1 and B > 128:
        n_tiles = 2
    tb = _round_up(_cdiv(B, n_tiles), 16)      # minimal padding, mult. of 16
    Bp = tb * n_tiles

    # Cheap batch-dim-only pad (skipped when already aligned). Feature dim
    # stays at its true width; bf16 cast happens inside the kernel.
    xp = x if Bp == B else jnp.pad(x, ((0, Bp - B), (0, 0)))

    grid = (n_tiles,)
    resident = lambda shape: pl.BlockSpec(shape, lambda i: (0, 0))  # VMEM-resident

    # ---- VMEM budget (computed from footprint, clamped to 16..32 MiB) ------
    weight_bytes = (d_in * H1 + H1 * H2 + H2 * C) * 2 + (H1 + H2 + C) * 4
    io_bytes = 2 * (tb * d_in * 4) + 2 * (tb * C * 4)      # double-buffered x/out
    interm_bytes = tb * (H1 + H2) * 4                      # h1/h2 f32 live values
    vmem_need = weight_bytes + io_bytes + interm_bytes
    vmem_limit = min(32 * 1024 * 1024, max(16 * 1024 * 1024, 4 * vmem_need))

    flops = 2 * Bp * (d_in * H1 + H1 * H2 + H2 * C)
    bytes_accessed = (
        Bp * d_in * 4 + weight_bytes + Bp * C * 4
    )

    out_padded = pl.pallas_call(
        mlp_kernel,
        out_shape=jax.ShapeDtypeStruct((Bp, C), jnp.float32),
        grid_spec=pltpu.PrefetchScalarGridSpec(
            num_scalar_prefetch=0,
            grid=grid,
            in_specs=[
                pl.BlockSpec((tb, d_in), lambda i: (i, 0)),   # x tile (f32, true K)
                resident((d_in, H1)), resident((1, H1)),      # fc1
                resident((H1, H2)), resident((1, H2)),        # fc2
                resident((H2, C)), resident((1, C)),          # fc3
            ],
            out_specs=pl.BlockSpec((tb, C), lambda i: (i, 0)),
        ),
        compiler_params=pltpu.CompilerParams(
            dimension_semantics=("parallel",),   # shards batch across TCs on v7x
            vmem_limit_bytes=int(vmem_limit),
        ),
        cost_estimate=pl.CostEstimate(
            flops=flops, transcendentals=0, bytes_accessed=bytes_accessed),
    )(xp, w1p, b1p, w2p, b2p, w3p, b3p)

    # Slice the lane-dense padded output back to the true logits.
    return out_padded[:B, :num_classes]


def reference_forward(x, w1, b1, w2, b2, w3, b3):
    """Same arithmetic (bf16 matmul operands, f32 accumulation) in plain JAX."""
    def mm(a, b):
        return jnp.dot(a.astype(jnp.bfloat16), b.astype(jnp.bfloat16),
                       preferred_element_type=jnp.float32)
    h1 = jnp.maximum(mm(x, w1) + b1.reshape(1, -1), 0.0)
    h2 = jnp.maximum(mm(h1, w2) + b2.reshape(1, -1), 0.0)
    return mm(h2, w3) + b3.reshape(1, -1)


if __name__ == "__main__":
    # Small deterministic shapes consistent with the module's forward:
    # features (B, input_size) -> 500 -> 300 -> num_classes
    input_size = 64
    hidden_size = 500
    hidden_size2 = 300
    num_classes = 10

    key = jax.random.PRNGKey(0)
    kx, kx2, k1, k2, k3, kb1, kb2, kb3 = jax.random.split(key, 8)

    # Weights stored as (in, out) (transposed vs nn.Linear's (out, in)).
    w1 = jax.random.normal(k1, (input_size, hidden_size), jnp.float32) * (1.0 / jnp.sqrt(input_size))
    b1 = (jax.random.uniform(kb1, (hidden_size,), jnp.float32) - 0.5) * 0.02
    w2 = jax.random.normal(k2, (hidden_size, hidden_size2), jnp.float32) * (1.0 / jnp.sqrt(hidden_size))
    b2 = (jax.random.uniform(kb2, (hidden_size2,), jnp.float32) - 0.5) * 0.02
    w3 = jax.random.normal(k3, (hidden_size2, num_classes), jnp.float32) * (1.0 / jnp.sqrt(hidden_size2))
    b3 = (jax.random.uniform(kb3, (num_classes,), jnp.float32) - 0.5) * 0.02

    # One-time packing (model-load time).
    packed = pack_params(w1, b1, w2, b2, w3, b3)
    packed = jax.block_until_ready(packed)

    # --- case 1: tiny batch (single tile) ---
    batch = 8
    x = jax.random.normal(kx, (batch, input_size), dtype=jnp.float32)
    out = neural_net_forward(x, *packed, num_classes=num_classes)
    out = jax.block_until_ready(out)

    ref = reference_forward(x, w1, b1, w2, b2, w3, b3)
    assert out.shape == (batch, num_classes), out.shape
    assert jnp.allclose(out, ref, atol=5e-3, rtol=5e-3), \
        f"mismatch vs reference: max abs err {jnp.max(jnp.abs(out - ref))}"

    # Loose sanity check against the pure-f32 math as well.
    h1f = jnp.maximum(x @ w1 + b1, 0.0)
    h2f = jnp.maximum(h1f @ w2 + b2, 0.0)
    ref_f32 = h2f @ w3 + b3
    assert jnp.max(jnp.abs(out - ref_f32)) < 0.15, "bf16 drift too large"

    # --- case 2: awkward batch (exercises multi-step grid + minimal pad) ---
    batch2 = 300
    x2 = jax.random.normal(kx2, (batch2, input_size), dtype=jnp.float32)
    out2 = neural_net_forward(x2, *packed, num_classes=num_classes)
    out2 = jax.block_until_ready(out2)
    ref2 = reference_forward(x2, w1, b1, w2, b2, w3, b3)
    assert out2.shape == (batch2, num_classes), out2.shape
    assert jnp.allclose(out2, ref2, atol=5e-3, rtol=5e-3), \
        f"mismatch vs reference (B=300): max abs err {jnp.max(jnp.abs(out2 - ref2))}"

    print("KERNEL_OK")
</pallas_src>

<mosaic_0001>
module attributes {stable_mosaic.version = 11 : i64} {
  func.func @mlp_kernel(%arg0: i32, %arg1: memref<16x64xf32, #tpu.memory_space<vmem>>, %arg2: memref<64x512xbf16, #tpu.memory_space<vmem>>, %arg3: memref<1x512xf32, #tpu.memory_space<vmem>>, %arg4: memref<512x384xbf16, #tpu.memory_space<vmem>>, %arg5: memref<1x384xf32, #tpu.memory_space<vmem>>, %arg6: memref<384x128xbf16, #tpu.memory_space<vmem>>, %arg7: memref<1x128xf32, #tpu.memory_space<vmem>>, %arg8: memref<16x128xf32, #tpu.memory_space<vmem>>) attributes {dimension_semantics = [#tpu.dimension_semantics<parallel>], iteration_bounds = array<i64: 1>, scalar_prefetch = 0 : i64, scratch_operands = 0 : i64, tpu.core_type = #tpu.core_type<tc>, window_params = [{transform_indices = @transform_0, window_bounds = array<i64: 16, 64>}, {pipeline_mode = #tpu.pipeline_mode<synchronous>, transform_indices = @transform_1, window_bounds = array<i64: 64, 512>}, {pipeline_mode = #tpu.pipeline_mode<synchronous>, transform_indices = @transform_2, window_bounds = array<i64: 1, 512>}, {pipeline_mode = #tpu.pipeline_mode<synchronous>, transform_indices = @transform_3, window_bounds = array<i64: 512, 384>}, {pipeline_mode = #tpu.pipeline_mode<synchronous>, transform_indices = @transform_4, window_bounds = array<i64: 1, 384>}, {pipeline_mode = #tpu.pipeline_mode<synchronous>, transform_indices = @transform_5, window_bounds = array<i64: 384, 128>}, {pipeline_mode = #tpu.pipeline_mode<synchronous>, transform_indices = @transform_6, window_bounds = array<i64: 1, 128>}, {transform_indices = @transform_7, window_bounds = array<i64: 16, 128>}]} {
    %c0 = arith.constant 0 : index
    %c0_0 = arith.constant 0 : index
    %0 = vector.load %arg3[%c0, %c0_0] : memref<1x512xf32, #tpu.memory_space<vmem>>, vector<1x512xf32>
    %c0_1 = arith.constant 0 : index
    %c0_2 = arith.constant 0 : index
    %1 = vector.load %arg5[%c0_1, %c0_2] : memref<1x384xf32, #tpu.memory_space<vmem>>, vector<1x384xf32>
    %c0_3 = arith.constant 0 : index
    %c0_4 = arith.constant 0 : index
    %2 = vector.load %arg7[%c0_3, %c0_4] : memref<1x128xf32, #tpu.memory_space<vmem>>, vector<1x128xf32>
    %c0_5 = arith.constant 0 : index
    %c0_6 = arith.constant 0 : index
    %3 = vector.load %arg1[%c0_5, %c0_6] : memref<16x64xf32, #tpu.memory_space<vmem>>, vector<16x64xf32>
    %4 = arith.truncf %3 : vector<16x64xf32> to vector<16x64xbf16>
    %c0_7 = arith.constant 0 : index
    %c0_8 = arith.constant 0 : index
    %5 = vector.load %arg2[%c0_7, %c0_8] : memref<64x512xbf16, #tpu.memory_space<vmem>>, vector<64x512xbf16>
    %cst = arith.constant dense<0.000000e+00> : vector<16x512xf32>
    %6 = tpu.matmul %4, %5, %cst {dimension_numbers = #tpu.dot_dimension_numbers<[1], [0], [0], [1], [0, 0, 1, 1], [], []>} : vector<16x64xbf16>, vector<64x512xbf16>, vector<16x512xf32> -> vector<16x512xf32>
    %7 = vector.broadcast %0 : vector<1x512xf32> to vector<16x512xf32>
    %8 = arith.addf %6, %7 : vector<16x512xf32>
    %cst_9 = arith.constant 0.000000e+00 : f32
    %9 = vector.broadcast %cst_9 : f32 to vector<16x512xf32>
    %10 = arith.maximumf %8, %9 : vector<16x512xf32>
    %11 = arith.truncf %10 : vector<16x512xf32> to vector<16x512xbf16>
    %c0_10 = arith.constant 0 : index
    %c0_11 = arith.constant 0 : index
    %12 = vector.load %arg4[%c0_10, %c0_11] : memref<512x384xbf16, #tpu.memory_space<vmem>>, vector<512x384xbf16>
    %cst_12 = arith.constant dense<0.000000e+00> : vector<16x384xf32>
    %13 = tpu.matmul %11, %12, %cst_12 {dimension_numbers = #tpu.dot_dimension_numbers<[1], [0], [0], [1], [0, 0, 1, 1], [], []>} : vector<16x512xbf16>, vector<512x384xbf16>, vector<16x384xf32> -> vector<16x384xf32>
    %14 = vector.broadcast %1 : vector<1x384xf32> to vector<16x384xf32>
    %15 = arith.addf %13, %14 : vector<16x384xf32>
    %cst_13 = arith.constant 0.000000e+00 : f32
    %16 = vector.broadcast %cst_13 : f32 to vector<16x384xf32>
    %17 = arith.maximumf %15, %16 : vector<16x384xf32>
    %18 = arith.truncf %17 : vector<16x384xf32> to vector<16x384xbf16>
    %c0_14 = arith.constant 0 : index
    %c0_15 = arith.constant 0 : index
    %19 = vector.load %arg6[%c0_14, %c0_15] : memref<384x128xbf16, #tpu.memory_space<vmem>>, vector<384x128xbf16>
    %cst_16 = arith.constant dense<0.000000e+00> : vector<16x128xf32>
    %20 = tpu.matmul %18, %19, %cst_16 {dimension_numbers = #tpu.dot_dimension_numbers<[1], [0], [0], [1], [0, 0, 1, 1], [], []>} : vector<16x384xbf16>, vector<384x128xbf16>, vector<16x128xf32> -> vector<16x128xf32>
    %21 = vector.broadcast %2 : vector<1x128xf32> to vector<16x128xf32>
    %22 = arith.addf %20, %21 : vector<16x128xf32>
    %c0_17 = arith.constant 0 : index
    %c0_18 = arith.constant 0 : index
    %23 = vector.load %arg8[%c0_17, %c0_18] : memref<16x128xf32, #tpu.memory_space<vmem>>, vector<16x128xf32>
    tpu.vector_store %arg8[%c0_17, %c0_18], %22 {strides = array<i32>} : memref<16x128xf32, #tpu.memory_space<vmem>>, vector<16x128xf32>,
    return
  }
  func.func @transform_0(%arg0: i32) -> (i32, i32) {
    %c0_i32 = arith.constant 0 : i32
    %c0_i32_0 = arith.constant 0 : i32
    return %arg0, %c0_i32 : i32, i32
  }
  func.func @transform_1(%arg0: i32) -> (i32, i32) {
    %c0_i32 = arith.constant 0 : i32
    %c0_i32_0 = arith.constant 0 : i32
    %c0_i32_1 = arith.constant 0 : i32
    return %c0_i32, %c0_i32_0 : i32, i32
  }
  func.func @transform_2(%arg0: i32) -> (i32, i32) {
    %c0_i32 = arith.constant 0 : i32
    %c0_i32_0 = arith.constant 0 : i32
    %c0_i32_1 = arith.constant 0 : i32
    return %c0_i32, %c0_i32_0 : i32, i32
  }
  func.func @transform_3(%arg0: i32) -> (i32, i32) {
    %c0_i32 = arith.constant 0 : i32
    %c0_i32_0 = arith.constant 0 : i32
    %c0_i32_1 = arith.constant 0 : i32
    return %c0_i32, %c0_i32_0 : i32, i32
  }
  func.func @transform_4(%arg0: i32) -> (i32, i32) {
    %c0_i32 = arith.constant 0 : i32
    %c0_i32_0 = arith.constant 0 : i32
    %c0_i32_1 = arith.constant 0 : i32
    return %c0_i32, %c0_i32_0 : i32, i32
  }
  func.func @transform_5(%arg0: i32) -> (i32, i32) {
    %c0_i32 = arith.constant 0 : i32
    %c0_i32_0 = arith.constant 0 : i32
    %c0_i32_1 = arith.constant 0 : i32
    return %c0_i32, %c0_i32_0 : i32, i32
  }
  func.func @transform_6(%arg0: i32) -> (i32, i32) {
    %c0_i32 = arith.constant 0 : i32
    %c0_i32_0 = arith.constant 0 : i32
    %c0_i32_1 = arith.constant 0 : i32
    return %c0_i32, %c0_i32_0 : i32, i32
  }
  func.func @transform_7(%arg0: i32) -> (i32, i32) {
    %c0_i32 = arith.constant 0 : i32
    %c0_i32_0 = arith.constant 0 : i32
    return %arg0, %c0_i32 : i32, i32
  }
}

</mosaic_0001>

<llo_original>
// kernel: neural_net_forward.1
$region0: #{neural_net_forward.1}
  #allocation0 [shape = 'u32[]', space=smem, size = 0x4, offset = 0x4, fixed_abs, tag = 'smem constant byte address 0x4 - core index']
  #allocation1 [shape = 'u32[144,128]{1,0:T(1,128)}', space=vmem, size = 0x12000, scoped, tag = 'internal scratch']
  %s0 = inlined_call_operand.vmem [shape: f32[16,64], index: 0, kind: input, shape index: {}]
  %s1 = inlined_call_operand.hbm [shape: bf16[64,512], index: 1, kind: input, shape index: {}]
  %s2 = inlined_call_operand.vmem [shape: f32[1,512], index: 2, kind: input, shape index: {}]
  %s3 = inlined_call_operand.hbm [shape: bf16[512,384], index: 3, kind: input, shape index: {}]
  %s4 = inlined_call_operand.vmem [shape: f32[1,384], index: 4, kind: input, shape index: {}]
  %s5 = inlined_call_operand.hbm [shape: bf16[384,128], index: 5, kind: input, shape index: {}]
  %s6 = inlined_call_operand.vmem [shape: f32[1,128], index: 6, kind: input, shape index: {}]
  %s7 = inlined_call_operand.vmem [shape: f32[16,128], index: 7, kind: output, shape index: {}]
  %s8 = sld [smem:[#allocation0]]
  $region50: #{neural_net_forward.1} parent=0
    _
  %s10 = ssub.s32 1, %s8
  %s11 = scalar_select 0, %s10, %s8
  $region1: #{neural_net_forward.1} parent=0
    #allocation2 [shape = 'u8[65536]{0}', space=vmem, size = 0x10000, scoped, tag = 'input window, operand 1, single buffered']
    #allocation3 [shape = 's32[1]{0}', space=sflag, size = 0x4, scoped, tag = 'scoped memory for neural_net_forward.1']
    #allocation4 [shape = 'u8[393216]{0}', space=vmem, size = 0x60000, scoped, tag = 'input window, operand 3, single buffered']
    #allocation5 [shape = 's32[1]{0}', space=sflag, size = 0x4, scoped, tag = 'scoped memory for neural_net_forward.1']
    #allocation6 [shape = 'u8[98304]{0}', space=vmem, size = 0x18000, scoped, tag = 'input window, operand 5, single buffered']
    %12 = vsyncpa [#allocation3], 0
    %13 = vsyncpa [#allocation5], 0
    // Predicated region
    $region2: #{neural_net_forward.1} parent=1 // pred_check
      _
    $region3: #{neural_net_forward.1} parent=1 // pred_check_branch
      %15 = sbr.rel (0) target = $region5
    $region4: #{neural_net_forward.1} parent=1 // pred_region
      _
    $region5: #{neural_net_forward.1} parent=1 // pred_fallthru
      _
    // Predicated region
    $region6: #{neural_net_forward.1} parent=1 // pred_check
      _
    $region7: #{neural_net_forward.1} parent=1 // pred_check_branch
      %17 = sbr.rel (0) target = $region9
    $region8: #{neural_net_forward.1} parent=1 // pred_region
      %s19 = ssub.s32 2048, 2048
      %20 = vsyncadd [#allocation3], %s19
      %s21 = sshll.u32 [#allocation2], 4
      %s22 = int_to_ptr.vmem [resolvable:$true] %s21
      %27 = dma.hbm_to_vmem [thread:$0]  %s1, 2048, %s22, [#allocation3], 256, 256, 16
    $region9: #{neural_net_forward.1} parent=1 // pred_fallthru
      _
    // Predicated region
    $region10: #{neural_net_forward.1} parent=1 // pred_check
      _
    $region11: #{neural_net_forward.1} parent=1 // pred_check_branch
      %29 = sbr.rel (0) target = $region13
    $region12: #{neural_net_forward.1} parent=1 // pred_region
      _
    $region13: #{neural_net_forward.1} parent=1 // pred_fallthru
      _
    // Predicated region
    $region14: #{neural_net_forward.1} parent=1 // pred_check
      _
    $region15: #{neural_net_forward.1} parent=1 // pred_check_branch
      %31 = sbr.rel (0) target = $region17
    $region16: #{neural_net_forward.1} parent=1 // pred_region
      %s33 = ssub.s32 12288, 12288
      %34 = vsyncadd [#allocation5], %s33
      %s35 = sshll.u32 [#allocation4], 4
      %s36 = int_to_ptr.vmem [resolvable:$true] %s35
      %41 = dma.hbm_to_vmem [thread:$0]  %s3, 12288, %s36, [#allocation5], 192, 192, 12
    $region17: #{neural_net_forward.1} parent=1 // pred_fallthru
      _
    // Predicated region
    $region18: #{neural_net_forward.1} parent=1 // pred_check
      _
    $region19: #{neural_net_forward.1} parent=1 // pred_check_branch
      %43 = sbr.rel (0) target = $region21
    $region20: #{neural_net_forward.1} parent=1 // pred_region
      _
    $region21: #{neural_net_forward.1} parent=1 // pred_fallthru
      _
    // Predicated region
    $region22: #{neural_net_forward.1} parent=1 // pred_check
      _
    $region23: #{neural_net_forward.1} parent=1 // pred_check_branch
      %45 = sbr.rel (0) target = $region25
    $region24: #{neural_net_forward.1} parent=1 // pred_region
      %s47 = ssub.s32 3072, 3072
      %48 = vsyncadd [#allocation5], %s47
      %s49 = sshll.u32 [#allocation6], 4
      %s50 = int_to_ptr.vmem [resolvable:$true] %s49
      %55 = dma.hbm_to_vmem [thread:$0]  %s5, 3072, %s50, [#allocation5], 64, 64, 4
    $region25: #{neural_net_forward.1} parent=1 // pred_fallthru
      _
    // Predicated region
    $region26: #{neural_net_forward.1} parent=1 // pred_check
      _
    $region27: #{neural_net_forward.1} parent=1 // pred_check_branch
      %57 = sbr.rel (0) target = $region29
    $region28: #{neural_net_forward.1} parent=1 // pred_region
      _
    $region29: #{neural_net_forward.1} parent=1 // pred_fallthru
      _
    // Predicated region
    $region30: #{neural_net_forward.1} parent=1 // pred_check
      _
    $region31: #{neural_net_forward.1} parent=1 // pred_check_branch
      %59 = sbr.rel (0) target = $region33
    $region32: #{neural_net_forward.1} parent=1 // pred_region
      %60 = dma.done [#allocation3], 2048
    $region33: #{neural_net_forward.1} parent=1 // pred_fallthru
      _
    // Predicated region
    $region34: #{neural_net_forward.1} parent=1 // pred_check
      _
    $region35: #{neural_net_forward.1} parent=1 // pred_check_branch
      %62 = sbr.rel (0) target = $region37
    $region36: #{neural_net_forward.1} parent=1 // pred_region
      %63 = dma.done [#allocation5], 12288
    $region37: #{neural_net_forward.1} parent=1 // pred_fallthru
      _
    // Predicated region
    $region38: #{neural_net_forward.1} parent=1 // pred_check
      _
    $region39: #{neural_net_forward.1} parent=1 // pred_check_branch
      %65 = sbr.rel (0) target = $region41
    $region40: #{neural_net_forward.1} parent=1 // pred_region
      %66 = dma.done [#allocation5], 3072
    $region41: #{neural_net_forward.1} parent=1 // pred_fallthru
      _
    %v68 = vld [vmem:[%s2] sm:$0xf]
    %v69 = vld [vmem:[%s4] sm:$0x7]
    %v70 = vld [vmem:[%s6] sm:$0x1]
    %v71 = vld [vmem:[%s0] sm:$0xff]
    %v72 = vld [vmem:[%s0 + $0x8] sm:$0xff]
    %v73 = vpack.c.bf16 %v72, %v71
    %v74 = vld [vmem:[#allocation2] sm:$0xff]
    %v75 = vld [vmem:[#allocation2 + $0x8] sm:$0xff]
    %v76 = vld [vmem:[#allocation2 + $0x10] sm:$0xff]
    %v77 = vld [vmem:[#allocation2 + $0x18] sm:$0xff]
    %v78 = vld [vmem:[#allocation2 + $0x20] sm:$0xff]
    %v79 = vld [vmem:[#allocation2 + $0x28] sm:$0xff]
    %v80 = vld [vmem:[#allocation2 + $0x30] sm:$0xff]
    %v81 = vld [vmem:[#allocation2 + $0x38] sm:$0xff]
    %v82 = vld [vmem:[#allocation2 + $0x40] sm:$0xff]
    %v83 = vld [vmem:[#allocation2 + $0x48] sm:$0xff]
    %v84 = vld [vmem:[#allocation2 + $0x50] sm:$0xff]
    %v85 = vld [vmem:[#allocation2 + $0x58] sm:$0xff]
    %v86 = vld [vmem:[#allocation2 + $0x60] sm:$0xff]
    %v87 = vld [vmem:[#allocation2 + $0x68] sm:$0xff]
    %v88 = vld [vmem:[#allocation2 + $0x70] sm:$0xff]
    %v89 = vld [vmem:[#allocation2 + $0x78] sm:$0xff]
    %v91 = vlaneseq
    %v92 = vshrl.u32 %v91, 7
    %v93 = vsub.s32 0, %v92
    %v94 = vrot.slane %v68, %v93
    %v95 = vlaneseq
    %v96 = vshrl.u32 %v95, 7
    %v97 = vsub.s32 1, %v96
    %v98 = vrot.slane %v68, %v97
    %v99 = vlaneseq
    %v100 = vshrl.u32 %v99, 7
    %v101 = vsub.s32 2, %v100
    %v102 = vrot.slane %v68, %v101
    %v103 = vlaneseq
    %v104 = vshrl.u32 %v103, 7
    %v105 = vsub.s32 3, %v104
    %v106 = vrot.slane %v68, %v105
    %v127 = vunpack.c.l.b16 %v74
    %v128 = vunpack.c.h.b16 %v74
    %v129 = vunpack.c.l.b16 %v75
    %v130 = vunpack.c.h.b16 %v75
    %v131 = vunpack.c.l.b16 %v76
    %v132 = vunpack.c.h.b16 %v76
    %v133 = vunpack.c.l.b16 %v77
    %v134 = vunpack.c.h.b16 %v77
    %v135 = vunpack.c.l.b16 %v78
    %v136 = vunpack.c.h.b16 %v78
    %v137 = vunpack.c.l.b16 %v79
    %v138 = vunpack.c.h.b16 %v79
    %v139 = vunpack.c.l.b16 %v80
    %v140 = vunpack.c.h.b16 %v80
    %v141 = vunpack.c.l.b16 %v81
    %v142 = vunpack.c.h.b16 %v81
    %v143 = vunpack.c.l.b16 %v82
    %v144 = vunpack.c.h.b16 %v82
    %v145 = vunpack.c.l.b16 %v83
    %v146 = vunpack.c.h.b16 %v83
    %v147 = vunpack.c.l.b16 %v84
    %v148 = vunpack.c.h.b16 %v84
    %v149 = vunpack.c.l.b16 %v85
    %v150 = vunpack.c.h.b16 %v85
    %v151 = vunpack.c.l.b16 %v86
    %v152 = vunpack.c.h.b16 %v86
    %v153 = vunpack.c.l.b16 %v87
    %v154 = vunpack.c.h.b16 %v87
    %v155 = vunpack.c.l.b16 %v88
    %v156 = vunpack.c.h.b16 %v88
    %v157 = vunpack.c.l.b16 %v89
    %v158 = vunpack.c.h.b16 %v89
    %v159 = vpack.c.b16 %v131, %v127
    %v160 = vpack.c.b16 %v132, %v128
    %v161 = vpack.c.b16 %v133, %v129
    %v162 = vpack.c.b16 %v134, %v130
    %v163 = vpack.c.b16 %v139, %v135
    %v164 = vpack.c.b16 %v140, %v136
    %v165 = vpack.c.b16 %v141, %v137
    %v166 = vpack.c.b16 %v142, %v138
    %v167 = vpack.c.b16 %v147, %v143
    %v168 = vpack.c.b16 %v148, %v144
    %v169 = vpack.c.b16 %v149, %v145
    %v170 = vpack.c.b16 %v150, %v146
    %v171 = vpack.c.b16 %v155, %v151
    %v172 = vpack.c.b16 %v156, %v152
    %v173 = vpack.c.b16 %v157, %v153
    %v174 = vpack.c.b16 %v158, %v154
    %vm191 = vcmask 523264
    %v193 = vsel %vm191, %v73, 0
    %195 = vmatprep.subr.bf16.mxu0 %v160
    %196 = vmatpush1.bf16.msra.mxu0 %v159
    %197 = vmatprep.subr.bf16.mxu0 %v164
    %198 = vmatpush1.bf16.msra.mxu0 %v163
    %199 = vmatprep.subr.bf16.mxu0 %v168
    %200 = vmatpush1.bf16.msra.mxu0 %v167
    %201 = vmatprep.subr.bf16.mxu0 %v172
    %202 = vmatpush1.bf16.msra.mxu0 %v171
    %203 = vmatprep.subr.bf16.mxu0 0
    %204 = vmatpush1.bf16.msra.mxu0 0
    %205 = vmatprep.subr.bf16.mxu0 0
    %206 = vmatpush1.bf16.msra.mxu0 0
    %207 = vmatprep.subr.bf16.mxu0 0
    %208 = vmatpush1.bf16.msra.mxu0 0
    %209 = vmatprep.subr.bf16.mxu0 0
    %210 = vmatpush1.bf16.msra.mxu0 0
    %211 = vmatprep.subr.bf16.mxu0 0
    %212 = vmatpush1.bf16.msra.mxu0 0
    %213 = vmatprep.subr.bf16.mxu0 0
    %214 = vmatpush1.bf16.msra.mxu0 0
    %215 = vmatprep.subr.bf16.mxu0 0
    %216 = vmatpush1.bf16.msra.mxu0 0
    %217 = vmatprep.subr.bf16.mxu0 0
    %218 = vmatpush1.bf16.msra.mxu0 0
    %219 = vmatprep.subr.bf16.mxu0 0
    %220 = vmatpush1.bf16.msra.mxu0 0
    %221 = vmatprep.subr.bf16.mxu0 0
    %222 = vmatpush1.bf16.msra.mxu0 0
    %223 = vmatprep.subr.bf16.mxu0 0
    %224 = vmatpush1.bf16.msra.mxu0 0
    %225 = vmatprep.subr.bf16.mxu0 0
    %226 = vmatpush1.bf16.msra.mxu0 0
    %227 = vmatprep.mubr.bf16.mxu0 0
    %228 = vmatmul.mubr.bf16.gmra.mrb[0].mxu0 %v193
    %v229 = vpop.f32.mrb[0].mxu0
    %v230 = vadd.f32 %v94, %v229
    %v231 = vpop.f32.mrb[0].mxu0
    %v232 = vadd.f32 %v98, %v231
    %v233 = vpop.f32.mrb[0].mxu0
    %v234 = vadd.f32 %v94, %v233
    %v235 = vpop.f32.mrb[0].mxu0
    %v236 = vadd.f32 %v98, %v235
    %237 = vdwg.mxu0
    %238 = vmatprep.subr.bf16.mxu0 %v162
    %239 = vmatpush1.bf16.msra.mxu0 %v161
    %240 = vmatprep.subr.bf16.mxu0 %v166
    %241 = vmatpush1.bf16.msra.mxu0 %v165
    %242 = vmatprep.subr.bf16.mxu0 %v170
    %243 = vmatpush1.bf16.msra.mxu0 %v169
    %244 = vmatprep.subr.bf16.mxu0 %v174
    %245 = vmatpush1.bf16.msra.mxu0 %v173
    %246 = vmatprep.subr.bf16.mxu0 0
    %247 = vmatpush1.bf16.msra.mxu0 0
    %248 = vmatprep.subr.bf16.mxu0 0
    %249 = vmatpush1.bf16.msra.mxu0 0
    %250 = vmatprep.subr.bf16.mxu0 0
    %251 = vmatpush1.bf16.msra.mxu0 0
    %252 = vmatprep.subr.bf16.mxu0 0
    %253 = vmatpush1.bf16.msra.mxu0 0
    %254 = vmatprep.subr.bf16.mxu0 0
    %255 = vmatpush1.bf16.msra.mxu0 0
    %256 = vmatprep.subr.bf16.mxu0 0
    %257 = vmatpush1.bf16.msra.mxu0 0
    %258 = vmatprep.subr.bf16.mxu0 0
    %259 = vmatpush1.bf16.msra.mxu0 0
    %260 = vmatprep.subr.bf16.mxu0 0
    %261 = vmatpush1.bf16.msra.mxu0 0
    %262 = vmatprep.subr.bf16.mxu0 0
    %263 = vmatpush1.bf16.msra.mxu0 0
    %264 = vmatprep.subr.bf16.mxu0 0
    %265 = vmatpush1.bf16.msra.mxu0 0
    %266 = vmatprep.subr.bf16.mxu0 0
    %267 = vmatpush1.bf16.msra.mxu0 0
    %268 = vmatprep.subr.bf16.mxu0 0
    %269 = vmatpush1.bf16.msra.mxu0 0
    %270 = vmatprep.mubr.bf16.mxu0 0
    %271 = vmatmul.mubr.bf16.gmra.mrb[0].mxu0 %v193
    %v272 = vpop.f32.mrb[0].mxu0
    %v273 = vadd.f32 %v102, %v272
    %v274 = vpop.f32.mrb[0].mxu0
    %v275 = vadd.f32 %v106, %v274
    %v276 = vpop.f32.mrb[0].mxu0
    %v277 = vadd.f32 %v102, %v276
    %v278 = vpop.f32.mrb[0].mxu0
    %v279 = vadd.f32 %v106, %v278
    %280 = vdwg.mxu0
    %v281 = vmax.f32 %v230, 0.0
    %v282 = vmax.f32 %v232, 0.0
    %v283 = vmax.f32 %v273, 0.0
    %v284 = vmax.f32 %v275, 0.0
    %v285 = vmax.f32 %v234, 0.0
    %v286 = vmax.f32 %v236, 0.0
    %v287 = vmax.f32 %v277, 0.0
    %v288 = vmax.f32 %v279, 0.0
    %v289 = vpack.c.bf16 %v285, %v281
    %v290 = vpack.c.bf16 %v286, %v282
    %v291 = vpack.c.bf16 %v287, %v283
    %v292 = vpack.c.bf16 %v288, %v284
    %v293 = vld [vmem:[#allocation4] sm:$0xff]
    %v294 = vld [vmem:[#allocation4 + $0x8] sm:$0xf]
    %v295 = vld [vmem:[#allocation4 + $0xc] sm:$0xff]
    %v296 = vld [vmem:[#allocation4 + $0x14] sm:$0xf]
    %v297 = vld [vmem:[#allocation4 + $0x18] sm:$0xff]
    %v298 = vld [vmem:[#allocation4 + $0x20] sm:$0xf]
    %v299 = vld [vmem:[#allocation4 + $0x24] sm:$0xff]
    %v300 = vld [vmem:[#allocation4 + $0x2c] sm:$0xf]
    %v301 = vld [vmem:[#allocation4 + $0x30] sm:$0xff]
    %v302 = vld [vmem:[#allocation4 + $0x38] sm:$0xf]
    %v303 = vld [vmem:[#allocation4 + $0x3c] sm:$0xff]
    %v304 = vld [vmem:[#allocation4 + $0x44] sm:$0xf]
    %v305 = vld [vmem:[#allocation4 + $0x48] sm:$0xff]
    %v306 = vld [vmem:[#allocation4 + $0x50] sm:$0xf]
    %v307 = vld [vmem:[#allocation4 + $0x54] sm:$0xff]
    %v308 = vld [vmem:[#allocation4 + $0x5c] sm:$0xf]
    %v309 = vld [vmem:[#allocation4 + $0x60] sm:$0xff]
    %v310 = vld [vmem:[#allocation4 + $0x68] sm:$0xf]
    %v311 = vld [vmem:[#allocation4 + $0x6c] sm:$0xff]
    %v312 = vld [vmem:[#allocation4 + $0x74] sm:$0xf]
    %v313 = vld [vmem:[#allocation4 + $0x78] sm:$0xff]
    %v314 = vld [vmem:[#allocation4 + $0x80] sm:$0xf]
    %v315 = vld [vmem:[#allocation4 + $0x84] sm:$0xff]
    %v316 = vld [vmem:[#allocation4 + $0x8c] sm:$0xf]
    %v317 = vld [vmem:[#allocation4 + $0x90] sm:$0xff]
    %v318 = vld [vmem:[#allocation4 + $0x98] sm:$0xf]
    %v319 = vld [vmem:[#allocation4 + $0x9c] sm:$0xff]
    %v320 = vld [vmem:[#allocation4 + $0xa4] sm:$0xf]
    %v321 = vld [vmem:[#allocation4 + $0xa8] sm:$0xff]
    %v322 = vld [vmem:[#allocation4 + $0xb0] sm:$0xf]
    %v323 = vld [vmem:[#allocation4 + $0xb4] sm:$0xff]
    %v324 = vld [vmem:[#allocation4 + $0xbc] sm:$0xf]
    %v325 = vld [vmem:[#allocation4 + $0xc0] sm:$0xff]
    %v326 = vld [vmem:[#allocation4 + $0xc8] sm:$0xf]
    %v327 = vld [vmem:[#allocation4 + $0xcc] sm:$0xff]
    %v328 = vld [vmem:[#allocation4 + $0xd4] sm:$0xf]
    %v329 = vld [vmem:[#allocation4 + $0xd8] sm:$0xff]
    %v330 = vld [vmem:[#allocation4 + $0xe0] sm:$0xf]
    %v331 = vld [vmem:[#allocation4 + $0xe4] sm:$0xff]
    %v332 = vld [vmem:[#allocation4 + $0xec] sm:$0xf]
    %v333 = vld [vmem:[#allocation4 + $0xf0] sm:$0xff]
    %v334 = vld [vmem:[#allocation4 + $0xf8] sm:$0xf]
    %v335 = vld [vmem:[#allocation4 + $0xfc] sm:$0xff]
    %v336 = vld [vmem:[#allocation4 + $0x104] sm:$0xf]
    %v337 = vld [vmem:[#allocation4 + $0x108] sm:$0xff]
    %v338 = vld [vmem:[#allocation4 + $0x110] sm:$0xf]
    %v339 = vld [vmem:[#allocation4 + $0x114] sm:$0xff]
    %v340 = vld [vmem:[#allocation4 + $0x11c] sm:$0xf]
    %v341 = vld [vmem:[#allocation4 + $0x120] sm:$0xff]
    %v342 = vld [vmem:[#allocation4 + $0x128] sm:$0xf]
    %v343 = vld [vmem:[#allocation4 + $0x12c] sm:$0xff]
    %v344 = vld [vmem:[#allocation4 + $0x134] sm:$0xf]
    %v345 = vld [vmem:[#allocation4 + $0x138] sm:$0xff]
    %v346 = vld [vmem:[#allocation4 + $0x140] sm:$0xf]
    %v347 = vld [vmem:[#allocation4 + $0x144] sm:$0xff]
    %v348 = vld [vmem:[#allocation4 + $0x14c] sm:$0xf]
    %v349 = vld [vmem:[#allocation4 + $0x150] sm:$0xff]
    %v350 = vld [vmem:[#allocation4 + $0x158] sm:$0xf]
    %v351 = vld [vmem:[#allocation4 + $0x15c] sm:$0xff]
    %v352 = vld [vmem:[#allocation4 + $0x164] sm:$0xf]
    %v353 = vld [vmem:[#allocation4 + $0x168] sm:$0xff]
    %v354 = vld [vmem:[#allocation4 + $0x170] sm:$0xf]
    %v355 = vld [vmem:[#allocation4 + $0x174] sm:$0xff]
    %v356 = vld [vmem:[#allocation4 + $0x17c] sm:$0xf]
    %v357 = vld [vmem:[#allocation4 + $0x180] sm:$0xff]
    %v358 = vld [vmem:[#allocation4 + $0x188] sm:$0xf]
    %v359 = vld [vmem:[#allocation4 + $0x18c] sm:$0xff]
    %v360 = vld [vmem:[#allocation4 + $0x194] sm:$0xf]
    %v361 = vld [vmem:[#allocation4 + $0x198] sm:$0xff]
    %v362 = vld [vmem:[#allocation4 + $0x1a0] sm:$0xf]
    %v363 = vld [vmem:[#allocation4 + $0x1a4] sm:$0xff]
    %v364 = vld [vmem:[#allocation4 + $0x1ac] sm:$0xf]
    %v365 = vld [vmem:[#allocation4 + $0x1b0] sm:$0xff]
    %v366 = vld [vmem:[#allocation4 + $0x1b8] sm:$0xf]
    %v367 = vld [vmem:[#allocation4 + $0x1bc] sm:$0xff]
    %v368 = vld [vmem:[#allocation4 + $0x1c4] sm:$0xf]
    %v369 = vld [vmem:[#allocation4 + $0x1c8] sm:$0xff]
    %v370 = vld [vmem:[#allocation4 + $0x1d0] sm:$0xf]
    %v371 = vld [vmem:[#allocation4 + $0x1d4] sm:$0xff]
    %v372 = vld [vmem:[#allocation4 + $0x1dc] sm:$0xf]
    %v373 = vld [vmem:[#allocation4 + $0x1e0] sm:$0xff]
    %v374 = vld [vmem:[#allocation4 + $0x1e8] sm:$0xf]
    %v375 = vld [vmem:[#allocation4 + $0x1ec] sm:$0xff]
    %v376 = vld [vmem:[#allocation4 + $0x1f4] sm:$0xf]
    %v377 = vld [vmem:[#allocation4 + $0x1f8] sm:$0xff]
    %v378 = vld [vmem:[#allocation4 + $0x200] sm:$0xf]
    %v379 = vld [vmem:[#allocation4 + $0x204] sm:$0xff]
    %v380 = vld [vmem:[#allocation4 + $0x20c] sm:$0xf]
    %v381 = vld [vmem:[#allocation4 + $0x210] sm:$0xff]
    %v382 = vld [vmem:[#allocation4 + $0x218] sm:$0xf]
    %v383 = vld [vmem:[#allocation4 + $0x21c] sm:$0xff]
    %v384 = vld [vmem:[#allocation4 + $0x224] sm:$0xf]
    %v385 = vld [vmem:[#allocation4 + $0x228] sm:$0xff]
    %v386 = vld [vmem:[#allocation4 + $0x230] sm:$0xf]
    %v387 = vld [vmem:[#allocation4 + $0x234] sm:$0xff]
    %v388 = vld [vmem:[#allocation4 + $0x23c] sm:$0xf]
    %v389 = vld [vmem:[#allocation4 + $0x240] sm:$0xff]
    %v390 = vld [vmem:[#allocation4 + $0x248] sm:$0xf]
    %v391 = vld [vmem:[#allocation4 + $0x24c] sm:$0xff]
    %v392 = vld [vmem:[#allocation4 + $0x254] sm:$0xf]
    %v393 = vld [vmem:[#allocation4 + $0x258] sm:$0xff]
    %v394 = vld [vmem:[#allocation4 + $0x260] sm:$0xf]
    %v395 = vld [vmem:[#allocation4 + $0x264] sm:$0xff]
    %v396 = vld [vmem:[#allocation4 + $0x26c] sm:$0xf]
    %v397 = vld [vmem:[#allocation4 + $0x270] sm:$0xff]
    %v398 = vld [vmem:[#allocation4 + $0x278] sm:$0xf]
    %v399 = vld [vmem:[#allocation4 + $0x27c] sm:$0xff]
    %v400 = vld [vmem:[#allocation4 + $0x284] sm:$0xf]
    %v401 = vld [vmem:[#allocation4 + $0x288] sm:$0xff]
    %v402 = vld [vmem:[#allocation4 + $0x290] sm:$0xf]
    %v403 = vld [vmem:[#allocation4 + $0x294] sm:$0xff]
    %v404 = vld [vmem:[#allocation4 + $0x29c] sm:$0xf]
    %v405 = vld [vmem:[#allocation4 + $0x2a0] sm:$0xff]
    %v406 = vld [vmem:[#allocation4 + $0x2a8] sm:$0xf]
    %v407 = vld [vmem:[#allocation4 + $0x2ac] sm:$0xff]
    %v408 = vld [vmem:[#allocation4 + $0x2b4] sm:$0xf]
    %v409 = vld [vmem:[#allocation4 + $0x2b8] sm:$0xff]
    %v410 = vld [vmem:[#allocation4 + $0x2c0] sm:$0xf]
    %v411 = vld [vmem:[#allocation4 + $0x2c4] sm:$0xff]
    %v412 = vld [vmem:[#allocation4 + $0x2cc] sm:$0xf]
    %v413 = vld [vmem:[#allocation4 + $0x2d0] sm:$0xff]
    %v414 = vld [vmem:[#allocation4 + $0x2d8] sm:$0xf]
    %v415 = vld [vmem:[#allocation4 + $0x2dc] sm:$0xff]
    %v416 = vld [vmem:[#allocation4 + $0x2e4] sm:$0xf]
    %v417 = vld [vmem:[#allocation4 + $0x2e8] sm:$0xff]
    %v418 = vld [vmem:[#allocation4 + $0x2f0] sm:$0xf]
    %v419 = vld [vmem:[#allocation4 + $0x2f4] sm:$0xff]
    %v420 = vld [vmem:[#allocation4 + $0x2fc] sm:$0xf]
    %v422 = vlaneseq
    %v423 = vshrl.u32 %v422, 7
    %v424 = vsub.s32 0, %v423
    %v425 = vrot.slane %v69, %v424
    %v426 = vlaneseq
    %v427 = vshrl.u32 %v426, 7
    %v428 = vsub.s32 1, %v427
    %v429 = vrot.slane %v69, %v428
    %v430 = vlaneseq
    %v431 = vshrl.u32 %v430, 7
    %v432 = vsub.s32 2, %v431
    %v433 = vrot.slane %v69, %v432
    %v565 = vunpack.c.l.b16 %v293
    %v566 = vunpack.c.h.b16 %v293
    %v567 = vunpack.c.l.b16 %v294
    %v568 = vunpack.c.l.b16 %v295
    %v569 = vunpack.c.h.b16 %v295
    %v570 = vunpack.c.l.b16 %v296
    %v571 = vunpack.c.l.b16 %v297
    %v572 = vunpack.c.h.b16 %v297
    %v573 = vunpack.c.l.b16 %v298
    %v574 = vunpack.c.l.b16 %v299
    %v575 = vunpack.c.h.b16 %v299
    %v576 = vunpack.c.l.b16 %v300
    %v577 = vunpack.c.l.b16 %v301
    %v578 = vunpack.c.h.b16 %v301
    %v579 = vunpack.c.l.b16 %v302
    %v580 = vunpack.c.l.b16 %v303
    %v581 = vunpack.c.h.b16 %v303
    %v582 = vunpack.c.l.b16 %v304
    %v583 = vunpack.c.l.b16 %v305
    %v584 = vunpack.c.h.b16 %v305
    %v585 = vunpack.c.l.b16 %v306
    %v586 = vunpack.c.l.b16 %v307
    %v587 = vunpack.c.h.b16 %v307
    %v588 = vunpack.c.l.b16 %v308
    %v589 = vunpack.c.l.b16 %v309
    %v590 = vunpack.c.h.b16 %v309
    %v591 = vunpack.c.l.b16 %v310
    %v592 = vunpack.c.l.b16 %v311
    %v593 = vunpack.c.h.b16 %v311
    %v594 = vunpack.c.l.b16 %v312
    %v595 = vunpack.c.l.b16 %v313
    %v596 = vunpack.c.h.b16 %v313
    %v597 = vunpack.c.l.b16 %v314
    %v598 = vunpack.c.l.b16 %v315
    %v599 = vunpack.c.h.b16 %v315
    %v600 = vunpack.c.l.b16 %v316
    %v601 = vunpack.c.l.b16 %v317
    %v602 = vunpack.c.h.b16 %v317
    %v603 = vunpack.c.l.b16 %v318
    %v604 = vunpack.c.l.b16 %v319
    %v605 = vunpack.c.h.b16 %v319
    %v606 = vunpack.c.l.b16 %v320
    %v607 = vunpack.c.l.b16 %v321
    %v608 = vunpack.c.h.b16 %v321
    %v609 = vunpack.c.l.b16 %v322
    %v610 = vunpack.c.l.b16 %v323
    %v611 = vunpack.c.h.b16 %v323
    %v612 = vunpack.c.l.b16 %v324
    %v613 = vunpack.c.l.b16 %v325
    %v614 = vunpack.c.h.b16 %v325
    %v615 = vunpack.c.l.b16 %v326
    %v616 = vunpack.c.l.b16 %v327
    %v617 = vunpack.c.h.b16 %v327
    %v618 = vunpack.c.l.b16 %v328
    %v619 = vunpack.c.l.b16 %v329
    %v620 = vunpack.c.h.b16 %v329
    %v621 = vunpack.c.l.b16 %v330
    %v622 = vunpack.c.l.b16 %v331
    %v623 = vunpack.c.h.b16 %v331
    %v624 = vunpack.c.l.b16 %v332
    %v625 = vunpack.c.l.b16 %v333
    %v626 = vunpack.c.h.b16 %v333
    %v627 = vunpack.c.l.b16 %v334
    %v628 = vunpack.c.l.b16 %v335
    %v629 = vunpack.c.h.b16 %v335
    %v630 = vunpack.c.l.b16 %v336
    %v631 = vunpack.c.l.b16 %v337
    %v632 = vunpack.c.h.b16 %v337
    %v633 = vunpack.c.l.b16 %v338
    %v634 = vunpack.c.l.b16 %v339
    %v635 = vunpack.c.h.b16 %v339
    %v636 = vunpack.c.l.b16 %v340
    %v637 = vunpack.c.l.b16 %v341
    %v638 = vunpack.c.h.b16 %v341
    %v639 = vunpack.c.l.b16 %v342
    %v640 = vunpack.c.l.b16 %v343
    %v641 = vunpack.c.h.b16 %v343
    %v642 = vunpack.c.l.b16 %v344
    %v643 = vunpack.c.l.b16 %v345
    %v644 = vunpack.c.h.b16 %v345
    %v645 = vunpack.c.l.b16 %v346
    %v646 = vunpack.c.l.b16 %v347
    %v647 = vunpack.c.h.b16 %v347
    %v648 = vunpack.c.l.b16 %v348
    %v649 = vunpack.c.l.b16 %v349
    %v650 = vunpack.c.h.b16 %v349
    %v651 = vunpack.c.l.b16 %v350
    %v652 = vunpack.c.l.b16 %v351
    %v653 = vunpack.c.h.b16 %v351
    %v654 = vunpack.c.l.b16 %v352
    %v655 = vunpack.c.l.b16 %v353
    %v656 = vunpack.c.h.b16 %v353
    %v657 = vunpack.c.l.b16 %v354
    %v658 = vunpack.c.l.b16 %v355
    %v659 = vunpack.c.h.b16 %v355
    %v660 = vunpack.c.l.b16 %v356
    %v661 = vunpack.c.l.b16 %v357
    %v662 = vunpack.c.h.b16 %v357
    %v663 = vunpack.c.l.b16 %v358
    %v664 = vunpack.c.l.b16 %v359
    %v665 = vunpack.c.h.b16 %v359
    %v666 = vunpack.c.l.b16 %v360
    %v667 = vunpack.c.l.b16 %v361
    %v668 = vunpack.c.h.b16 %v361
    %v669 = vunpack.c.l.b16 %v362
    %v670 = vunpack.c.l.b16 %v363
    %v671 = vunpack.c.h.b16 %v363
    %v672 = vunpack.c.l.b16 %v364
    %v673 = vunpack.c.l.b16 %v365
    %v674 = vunpack.c.h.b16 %v365
    %v675 = vunpack.c.l.b16 %v366
    %v676 = vunpack.c.l.b16 %v367
    %v677 = vunpack.c.h.b16 %v367
    %v678 = vunpack.c.l.b16 %v368
    %v679 = vunpack.c.l.b16 %v369
    %v680 = vunpack.c.h.b16 %v369
    %v681 = vunpack.c.l.b16 %v370
    %v682 = vunpack.c.l.b16 %v371
    %v683 = vunpack.c.h.b16 %v371
    %v684 = vunpack.c.l.b16 %v372
    %v685 = vunpack.c.l.b16 %v373
    %v686 = vunpack.c.h.b16 %v373
    %v687 = vunpack.c.l.b16 %v374
    %v688 = vunpack.c.l.b16 %v375
    %v689 = vunpack.c.h.b16 %v375
    %v690 = vunpack.c.l.b16 %v376
    %v691 = vunpack.c.l.b16 %v377
    %v692 = vunpack.c.h.b16 %v377
    %v693 = vunpack.c.l.b16 %v378
    %v694 = vunpack.c.l.b16 %v379
    %v695 = vunpack.c.h.b16 %v379
    %v696 = vunpack.c.l.b16 %v380
    %v697 = vunpack.c.l.b16 %v381
    %v698 = vunpack.c.h.b16 %v381
    %v699 = vunpack.c.l.b16 %v382
    %v700 = vunpack.c.l.b16 %v383
    %v701 = vunpack.c.h.b16 %v383
    %v702 = vunpack.c.l.b16 %v384
    %v703 = vunpack.c.l.b16 %v385
    %v704 = vunpack.c.h.b16 %v385
    %v705 = vunpack.c.l.b16 %v386
    %v706 = vunpack.c.l.b16 %v387
    %v707 = vunpack.c.h.b16 %v387
    %v708 = vunpack.c.l.b16 %v388
    %v709 = vunpack.c.l.b16 %v389
    %v710 = vunpack.c.h.b16 %v389
    %v711 = vunpack.c.l.b16 %v390
    %v712 = vunpack.c.l.b16 %v391
    %v713 = vunpack.c.h.b16 %v391
    %v714 = vunpack.c.l.b16 %v392
    %v715 = vunpack.c.l.b16 %v393
    %v716 = vunpack.c.h.b16 %v393
    %v717 = vunpack.c.l.b16 %v394
    %v718 = vunpack.c.l.b16 %v395
    %v719 = vunpack.c.h.b16 %v395
    %v720 = vunpack.c.l.b16 %v396
    %v721 = vunpack.c.l.b16 %v397
    %v722 = vunpack.c.h.b16 %v397
    %v723 = vunpack.c.l.b16 %v398
    %v724 = vunpack.c.l.b16 %v399
    %v725 = vunpack.c.h.b16 %v399
    %v726 = vunpack.c.l.b16 %v400
    %v727 = vunpack.c.l.b16 %v401
    %v728 = vunpack.c.h.b16 %v401
    %v729 = vunpack.c.l.b16 %v402
    %v730 = vunpack.c.l.b16 %v403
    %v731 = vunpack.c.h.b16 %v403
    %v732 = vunpack.c.l.b16 %v404
    %v733 = vunpack.c.l.b16 %v405
    %v734 = vunpack.c.h.b16 %v405
    %v735 = vunpack.c.l.b16 %v406
    %v736 = vunpack.c.l.b16 %v407
    %v737 = vunpack.c.h.b16 %v407
    %v738 = vunpack.c.l.b16 %v408
    %v739 = vunpack.c.l.b16 %v409
    %v740 = vunpack.c.h.b16 %v409
    %v741 = vunpack.c.l.b16 %v410
    %v742 = vunpack.c.l.b16 %v411
    %v743 = vunpack.c.h.b16 %v411
    %v744 = vunpack.c.l.b16 %v412
    %v745 = vunpack.c.l.b16 %v413
    %v746 = vunpack.c.h.b16 %v413
    %v747 = vunpack.c.l.b16 %v414
    %v748 = vunpack.c.l.b16 %v415
    %v749 = vunpack.c.h.b16 %v415
    %v750 = vunpack.c.l.b16 %v416
    %v751 = vunpack.c.l.b16 %v417
    %v752 = vunpack.c.h.b16 %v417
    %v753 = vunpack.c.l.b16 %v418
    %v754 = vunpack.c.l.b16 %v419
    %v755 = vunpack.c.h.b16 %v419
    %v756 = vunpack.c.l.b16 %v420
    %v757 = vpack.c.b16 %v568, %v565
    %v758 = vpack.c.b16 %v569, %v566
    %v759 = vpack.c.b16 %v570, %v567
    %v760 = vpack.c.b16 %v574, %v571
    %v761 = vpack.c.b16 %v575, %v572
    %v762 = vpack.c.b16 %v576, %v573
    %v763 = vpack.c.b16 %v580, %v577
    %v764 = vpack.c.b16 %v581, %v578
    %v765 = vpack.c.b16 %v582, %v579
    %v766 = vpack.c.b16 %v586, %v583
    %v767 = vpack.c.b16 %v587, %v584
    %v768 = vpack.c.b16 %v588, %v585
    %v769 = vpack.c.b16 %v592, %v589
    %v770 = vpack.c.b16 %v593, %v590
    %v771 = vpack.c.b16 %v594, %v591
    %v772 = vpack.c.b16 %v598, %v595
    %v773 = vpack.c.b16 %v599, %v596
    %v774 = vpack.c.b16 %v600, %v597
    %v775 = vpack.c.b16 %v604, %v601
    %v776 = vpack.c.b16 %v605, %v602
    %v777 = vpack.c.b16 %v606, %v603
    %v778 = vpack.c.b16 %v610, %v607
    %v779 = vpack.c.b16 %v611, %v608
    %v780 = vpack.c.b16 %v612, %v609
    %v781 = vpack.c.b16 %v616, %v613
    %v782 = vpack.c.b16 %v617, %v614
    %v783 = vpack.c.b16 %v618, %v615
    %v784 = vpack.c.b16 %v622, %v619
    %v785 = vpack.c.b16 %v623, %v620
    %v786 = vpack.c.b16 %v624, %v621
    %v787 = vpack.c.b16 %v628, %v625
    %v788 = vpack.c.b16 %v629, %v626
    %v789 = vpack.c.b16 %v630, %v627
    %v790 = vpack.c.b16 %v634, %v631
    %v791 = vpack.c.b16 %v635, %v632
    %v792 = vpack.c.b16 %v636, %v633
    %v793 = vpack.c.b16 %v640, %v637
    %v794 = vpack.c.b16 %v641, %v638
    %v795 = vpack.c.b16 %v642, %v639
    %v796 = vpack.c.b16 %v646, %v643
    %v797 = vpack.c.b16 %v647, %v644
    %v798 = vpack.c.b16 %v648, %v645
    %v799 = vpack.c.b16 %v652, %v649
    %v800 = vpack.c.b16 %v653, %v650
    %v801 = vpack.c.b16 %v654, %v651
    %v802 = vpack.c.b16 %v658, %v655
    %v803 = vpack.c.b16 %v659, %v656
    %v804 = vpack.c.b16 %v660, %v657
    %v805 = vpack.c.b16 %v664, %v661
    %v806 = vpack.c.b16 %v665, %v662
    %v807 = vpack.c.b16 %v666, %v663
    %v808 = vpack.c.b16 %v670, %v667
    %v809 = vpack.c.b16 %v671, %v668
    %v810 = vpack.c.b16 %v672, %v669
    %v811 = vpack.c.b16 %v676, %v673
    %v812 = vpack.c.b16 %v677, %v674
    %v813 = vpack.c.b16 %v678, %v675
    %v814 = vpack.c.b16 %v682, %v679
    %v815 = vpack.c.b16 %v683, %v680
    %v816 = vpack.c.b16 %v684, %v681
    %v817 = vpack.c.b16 %v688, %v685
    %v818 = vpack.c.b16 %v689, %v686
    %v819 = vpack.c.b16 %v690, %v687
    %v820 = vpack.c.b16 %v694, %v691
    %v821 = vpack.c.b16 %v695, %v692
    %v822 = vpack.c.b16 %v696, %v693
    %v823 = vpack.c.b16 %v700, %v697
    %v824 = vpack.c.b16 %v701, %v698
    %v825 = vpack.c.b16 %v702, %v699
    %v826 = vpack.c.b16 %v706, %v703
    %v827 = vpack.c.b16 %v707, %v704
    %v828 = vpack.c.b16 %v708, %v705
    %v829 = vpack.c.b16 %v712, %v709
    %v830 = vpack.c.b16 %v713, %v710
    %v831 = vpack.c.b16 %v714, %v711
    %v832 = vpack.c.b16 %v718, %v715
    %v833 = vpack.c.b16 %v719, %v716
    %v834 = vpack.c.b16 %v720, %v717
    %v835 = vpack.c.b16 %v724, %v721
    %v836 = vpack.c.b16 %v725, %v722
    %v837 = vpack.c.b16 %v726, %v723
    %v838 = vpack.c.b16 %v730, %v727
    %v839 = vpack.c.b16 %v731, %v728
    %v840 = vpack.c.b16 %v732, %v729
    %v841 = vpack.c.b16 %v736, %v733
    %v842 = vpack.c.b16 %v737, %v734
    %v843 = vpack.c.b16 %v738, %v735
    %v844 = vpack.c.b16 %v742, %v739
    %v845 = vpack.c.b16 %v743, %v740
    %v846 = vpack.c.b16 %v744, %v741
    %v847 = vpack.c.b16 %v748, %v745
    %v848 = vpack.c.b16 %v749, %v746
    %v849 = vpack.c.b16 %v750, %v747
    %v850 = vpack.c.b16 %v754, %v751
    %v851 = vpack.c.b16 %v755, %v752
    %v852 = vpack.c.b16 %v756, %v753
    %949 = vmatprep.subr.bf16.mxu0 %v758
    %950 = vmatpush1.bf16.msra.mxu0 %v757
    %951 = vmatprep.subr.bf16.mxu0 %v761
    %952 = vmatpush1.bf16.msra.mxu0 %v760
    %953 = vmatprep.subr.bf16.mxu0 %v764
    %954 = vmatpush1.bf16.msra.mxu0 %v763
    %955 = vmatprep.subr.bf16.mxu0 %v767
    %956 = vmatpush1.bf16.msra.mxu0 %v766
    %957 = vmatprep.subr.bf16.mxu0 %v770
    %958 = vmatpush1.bf16.msra.mxu0 %v769
    %959 = vmatprep.subr.bf16.mxu0 %v773
    %960 = vmatpush1.bf16.msra.mxu0 %v772
    %961 = vmatprep.subr.bf16.mxu0 %v776
    %962 = vmatpush1.bf16.msra.mxu0 %v775
    %963 = vmatprep.subr.bf16.mxu0 %v779
    %964 = vmatpush1.bf16.msra.mxu0 %v778
    %965 = vmatprep.subr.bf16.mxu0 %v782
    %966 = vmatpush1.bf16.msra.mxu0 %v781
    %967 = vmatprep.subr.bf16.mxu0 %v785
    %968 = vmatpush1.bf16.msra.mxu0 %v784
    %969 = vmatprep.subr.bf16.mxu0 %v788
    %970 = vmatpush1.bf16.msra.mxu0 %v787
    %971 = vmatprep.subr.bf16.mxu0 %v791
    %972 = vmatpush1.bf16.msra.mxu0 %v790
    %973 = vmatprep.subr.bf16.mxu0 %v794
    %974 = vmatpush1.bf16.msra.mxu0 %v793
    %975 = vmatprep.subr.bf16.mxu0 %v797
    %976 = vmatpush1.bf16.msra.mxu0 %v796
    %977 = vmatprep.subr.bf16.mxu0 %v800
    %978 = vmatpush1.bf16.msra.mxu0 %v799
    %979 = vmatprep.subr.bf16.mxu0 %v803
    %980 = vmatpush1.bf16.msra.mxu0 %v802
    %981 = vmatprep.mubr.bf16.mxu0 %v290
    %982 = vmatmul.mubr.bf16.gmra.mrb[0].mxu0 %v289
    %v983 = vpop.f32.mrb[0].mxu0
    %v984 = vadd.f32 %v425, %v983
    %v985 = vpop.f32.mrb[0].mxu0
    %v986 = vadd.f32 %v429, %v985
    %v987 = vpop.f32.mrb[0].mxu0
    %v988 = vadd.f32 %v425, %v987
    %v989 = vpop.f32.mrb[0].mxu0
    %v990 = vadd.f32 %v429, %v989
    %991 = vdwg.mxu0
    %992 = vmatprep.subr.bf16.mxu0 %v806
    %993 = vmatpush1.bf16.msra.mxu0 %v805
    %994 = vmatprep.subr.bf16.mxu0 %v809
    %995 = vmatpush1.bf16.msra.mxu0 %v808
    %996 = vmatprep.subr.bf16.mxu0 %v812
    %997 = vmatpush1.bf16.msra.mxu0 %v811
    %998 = vmatprep.subr.bf16.mxu0 %v815
    %999 = vmatpush1.bf16.msra.mxu0 %v814
    %1000 = vmatprep.subr.bf16.mxu0 %v818
    %1001 = vmatpush1.bf16.msra.mxu0 %v817
    %1002 = vmatprep.subr.bf16.mxu0 %v821
    %1003 = vmatpush1.bf16.msra.mxu0 %v820
    %1004 = vmatprep.subr.bf16.mxu0 %v824
    %1005 = vmatpush1.bf16.msra.mxu0 %v823
    %1006 = vmatprep.subr.bf16.mxu0 %v827
    %1007 = vmatpush1.bf16.msra.mxu0 %v826
    %1008 = vmatprep.subr.bf16.mxu0 %v830
    %1009 = vmatpush1.bf16.msra.mxu0 %v829
    %1010 = vmatprep.subr.bf16.mxu0 %v833
    %1011 = vmatpush1.bf16.msra.mxu0 %v832
    %1012 = vmatprep.subr.bf16.mxu0 %v836
    %1013 = vmatpush1.bf16.msra.mxu0 %v835
    %1014 = vmatprep.subr.bf16.mxu0 %v839
    %1015 = vmatpush1.bf16.msra.mxu0 %v838
    %1016 = vmatprep.subr.bf16.mxu0 %v842
    %1017 = vmatpush1.bf16.msra.mxu0 %v841
    %1018 = vmatprep.subr.bf16.mxu0 %v845
    %1019 = vmatpush1.bf16.msra.mxu0 %v844
    %1020 = vmatprep.subr.bf16.mxu0 %v848
    %1021 = vmatpush1.bf16.msra.mxu0 %v847
    %1022 = vmatprep.subr.bf16.mxu0 %v851
    %1023 = vmatpush1.bf16.msra.mxu0 %v850
    %1024 = vmatprep.mubr.bf16.mxu0 %v292
    %1025 = vmatmul.mubr.bf16.gmra.mrb[0].mxu0 %v291
    %v1026 = vpop.f32.mrb[0].mxu0
    %v1027 = vadd.f32 %v984, %v1026
    %v1028 = vpop.f32.mrb[0].mxu0
    %v1029 = vadd.f32 %v986, %v1028
    %v1030 = vpop.f32.mrb[0].mxu0
    %v1031 = vadd.f32 %v988, %v1030
    %v1032 = vpop.f32.mrb[0].mxu0
    %v1033 = vadd.f32 %v990, %v1032
    %1034 = vdwg.mxu0
    %1035 = vmatprep.subr.bf16.mxu0 0
    %1036 = vmatpush1.bf16.msra.mxu0 %v759
    %1037 = vmatprep.subr.bf16.mxu0 0
    %1038 = vmatpush1.bf16.msra.mxu0 %v762
    %1039 = vmatprep.subr.bf16.mxu0 0
    %1040 = vmatpush1.bf16.msra.mxu0 %v765
    %1041 = vmatprep.subr.bf16.mxu0 0
    %1042 = vmatpush1.bf16.msra.mxu0 %v768
    %1043 = vmatprep.subr.bf16.mxu0 0
    %1044 = vmatpush1.bf16.msra.mxu0 %v771
    %1045 = vmatprep.subr.bf16.mxu0 0
    %1046 = vmatpush1.bf16.msra.mxu0 %v774
    %1047 = vmatprep.subr.bf16.mxu0 0
    %1048 = vmatpush1.bf16.msra.mxu0 %v777
    %1049 = vmatprep.subr.bf16.mxu0 0
    %1050 = vmatpush1.bf16.msra.mxu0 %v780
    %1051 = vmatprep.subr.bf16.mxu0 0
    %1052 = vmatpush1.bf16.msra.mxu0 %v783
    %1053 = vmatprep.subr.bf16.mxu0 0
    %1054 = vmatpush1.bf16.msra.mxu0 %v786
    %1055 = vmatprep.subr.bf16.mxu0 0
    %1056 = vmatpush1.bf16.msra.mxu0 %v789
    %1057 = vmatprep.subr.bf16.mxu0 0
    %1058 = vmatpush1.bf16.msra.mxu0 %v792
    %1059 = vmatprep.subr.bf16.mxu0 0
    %1060 = vmatpush1.bf16.msra.mxu0 %v795
    %1061 = vmatprep.subr.bf16.mxu0 0
    %1062 = vmatpush1.bf16.msra.mxu0 %v798
    %1063 = vmatprep.subr.bf16.mxu0 0
    %1064 = vmatpush1.bf16.msra.mxu0 %v801
    %1065 = vmatprep.subr.bf16.mxu0 0
    %1066 = vmatpush1.bf16.msra.mxu0 %v804
    %1067 = vmatprep.mubr.bf16.mxu0 %v290
    %1068 = vmatmul.mubr.bf16.gmra.mrb[0].mxu0 %v289
    %v1069 = vpop.f32.mrb[0].mxu0
    %v1070 = vadd.f32 %v433, %v1069
    %v1071 = vpop.f32.mrb[0].mxu0
    %v1072 = vpop.f32.mrb[0].mxu0
    %v1073 = vadd.f32 %v433, %v1072
    %v1074 = vpop.f32.mrb[0].mxu0
    %1075 = vdwg.mxu0
    %1076 = vmatprep.subr.bf16.mxu0 0
    %1077 = vmatpush1.bf16.msra.mxu0 %v807
    %1078 = vmatprep.subr.bf16.mxu0 0
    %1079 = vmatpush1.bf16.msra.mxu0 %v810
    %1080 = vmatprep.subr.bf16.mxu0 0
    %1081 = vmatpush1.bf16.msra.mxu0 %v813
    %1082 = vmatprep.subr.bf16.mxu0 0
    %1083 = vmatpush1.bf16.msra.mxu0 %v816
    %1084 = vmatprep.subr.bf16.mxu0 0
    %1085 = vmatpush1.bf16.msra.mxu0 %v819
    %1086 = vmatprep.subr.bf16.mxu0 0
    %1087 = vmatpush1.bf16.msra.mxu0 %v822
    %1088 = vmatprep.subr.bf16.mxu0 0
    %1089 = vmatpush1.bf16.msra.mxu0 %v825
    %1090 = vmatprep.subr.bf16.mxu0 0
    %1091 = vmatpush1.bf16.msra.mxu0 %v828
    %1092 = vmatprep.subr.bf16.mxu0 0
    %1093 = vmatpush1.bf16.msra.mxu0 %v831
    %1094 = vmatprep.subr.bf16.mxu0 0
    %1095 = vmatpush1.bf16.msra.mxu0 %v834
    %1096 = vmatprep.subr.bf16.mxu0 0
    %1097 = vmatpush1.bf16.msra.mxu0 %v837
    %1098 = vmatprep.subr.bf16.mxu0 0
    %1099 = vmatpush1.bf16.msra.mxu0 %v840
    %1100 = vmatprep.subr.bf16.mxu0 0
    %1101 = vmatpush1.bf16.msra.mxu0 %v843
    %1102 = vmatprep.subr.bf16.mxu0 0
    %1103 = vmatpush1.bf16.msra.mxu0 %v846
    %1104 = vmatprep.subr.bf16.mxu0 0
    %1105 = vmatpush1.bf16.msra.mxu0 %v849
    %1106 = vmatprep.subr.bf16.mxu0 0
    %1107 = vmatpush1.bf16.msra.mxu0 %v852
    %1108 = vmatprep.mubr.bf16.mxu0 %v292
    %1109 = vmatmul.mubr.bf16.gmra.mrb[0].mxu0 %v291
    %v1110 = vpop.f32.mrb[0].mxu0
    %v1111 = vadd.f32 %v1070, %v1110
    %v1112 = vpop.f32.mrb[0].mxu0
    %v1113 = vpop.f32.mrb[0].mxu0
    %v1114 = vadd.f32 %v1073, %v1113
    %v1115 = vpop.f32.mrb[0].mxu0
    %1116 = vdwg.mxu0
    %v1117 = vmax.f32 %v1027, 0.0
    %v1118 = vmax.f32 %v1029, 0.0
    %v1119 = vmax.f32 %v1111, 0.0
    %v1120 = vmax.f32 %v1031, 0.0
    %v1121 = vmax.f32 %v1033, 0.0
    %v1122 = vmax.f32 %v1114, 0.0
    %v1123 = vpack.c.bf16 %v1120, %v1117
    %v1124 = vpack.c.bf16 %v1121, %v1118
    %v1125 = vpack.c.bf16 %v1122, %v1119
    %v1126 = vld [vmem:[#allocation6] sm:$0xf]
    %v1127 = vld [vmem:[#allocation6 + $0x4] sm:$0xf]
    %v1128 = vld [vmem:[#allocation6 + $0x8] sm:$0xf]
    %v1129 = vld [vmem:[#allocation6 + $0xc] sm:$0xf]
    %v1130 = vld [vmem:[#allocation6 + $0x10] sm:$0xf]
    %v1131 = vld [vmem:[#allocation6 + $0x14] sm:$0xf]
    %v1132 = vld [vmem:[#allocation6 + $0x18] sm:$0xf]
    %v1133 = vld [vmem:[#allocation6 + $0x1c] sm:$0xf]
    %v1134 = vld [vmem:[#allocation6 + $0x20] sm:$0xf]
    %v1135 = vld [vmem:[#allocation6 + $0x24] sm:$0xf]
    %v1136 = vld [vmem:[#allocation6 + $0x28] sm:$0xf]
    %v1137 = vld [vmem:[#allocation6 + $0x2c] sm:$0xf]
    %v1138 = vld [vmem:[#allocation6 + $0x30] sm:$0xf]
    %v1139 = vld [vmem:[#allocation6 + $0x34] sm:$0xf]
    %v1140 = vld [vmem:[#allocation6 + $0x38] sm:$0xf]
    %v1141 = vld [vmem:[#allocation6 + $0x3c] sm:$0xf]
    %v1142 = vld [vmem:[#allocation6 + $0x40] sm:$0xf]
    %v1143 = vld [vmem:[#allocation6 + $0x44] sm:$0xf]
    %v1144 = vld [vmem:[#allocation6 + $0x48] sm:$0xf]
    %v1145 = vld [vmem:[#allocation6 + $0x4c] sm:$0xf]
    %v1146 = vld [vmem:[#allocation6 + $0x50] sm:$0xf]
    %v1147 = vld [vmem:[#allocation6 + $0x54] sm:$0xf]
    %v1148 = vld [vmem:[#allocation6 + $0x58] sm:$0xf]
    %v1149 = vld [vmem:[#allocation6 + $0x5c] sm:$0xf]
    %v1150 = vld [vmem:[#allocation6 + $0x60] sm:$0xf]
    %v1151 = vld [vmem:[#allocation6 + $0x64] sm:$0xf]
    %v1152 = vld [vmem:[#allocation6 + $0x68] sm:$0xf]
    %v1153 = vld [vmem:[#allocation6 + $0x6c] sm:$0xf]
    %v1154 = vld [vmem:[#allocation6 + $0x70] sm:$0xf]
    %v1155 = vld [vmem:[#allocation6 + $0x74] sm:$0xf]
    %v1156 = vld [vmem:[#allocation6 + $0x78] sm:$0xf]
    %v1157 = vld [vmem:[#allocation6 + $0x7c] sm:$0xf]
    %v1158 = vld [vmem:[#allocation6 + $0x80] sm:$0xf]
    %v1159 = vld [vmem:[#allocation6 + $0x84] sm:$0xf]
    %v1160 = vld [vmem:[#allocation6 + $0x88] sm:$0xf]
    %v1161 = vld [vmem:[#allocation6 + $0x8c] sm:$0xf]
    %v1162 = vld [vmem:[#allocation6 + $0x90] sm:$0xf]
    %v1163 = vld [vmem:[#allocation6 + $0x94] sm:$0xf]
    %v1164 = vld [vmem:[#allocation6 + $0x98] sm:$0xf]
    %v1165 = vld [vmem:[#allocation6 + $0x9c] sm:$0xf]
    %v1166 = vld [vmem:[#allocation6 + $0xa0] sm:$0xf]
    %v1167 = vld [vmem:[#allocation6 + $0xa4] sm:$0xf]
    %v1168 = vld [vmem:[#allocation6 + $0xa8] sm:$0xf]
    %v1169 = vld [vmem:[#allocation6 + $0xac] sm:$0xf]
    %v1170 = vld [vmem:[#allocation6 + $0xb0] sm:$0xf]
    %v1171 = vld [vmem:[#allocation6 + $0xb4] sm:$0xf]
    %v1172 = vld [vmem:[#allocation6 + $0xb8] sm:$0xf]
    %v1173 = vld [vmem:[#allocation6 + $0xbc] sm:$0xf]
    %v1175 = vlaneseq
    %v1176 = vshrl.u32 %v1175, 7
    %v1177 = vsub.s32 0, %v1176
    %v1178 = vrot.slane %v70, %v1177
    %v1228 = vunpack.c.l.b16 %v1126
    %v1229 = vunpack.c.l.b16 %v1127
    %v1230 = vunpack.c.l.b16 %v1128
    %v1231 = vunpack.c.l.b16 %v1129
    %v1232 = vunpack.c.l.b16 %v1130
    %v1233 = vunpack.c.l.b16 %v1131
    %v1234 = vunpack.c.l.b16 %v1132
    %v1235 = vunpack.c.l.b16 %v1133
    %v1236 = vunpack.c.l.b16 %v1134
    %v1237 = vunpack.c.l.b16 %v1135
    %v1238 = vunpack.c.l.b16 %v1136
    %v1239 = vunpack.c.l.b16 %v1137
    %v1240 = vunpack.c.l.b16 %v1138
    %v1241 = vunpack.c.l.b16 %v1139
    %v1242 = vunpack.c.l.b16 %v1140
    %v1243 = vunpack.c.l.b16 %v1141
    %v1244 = vunpack.c.l.b16 %v1142
    %v1245 = vunpack.c.l.b16 %v1143
    %v1246 = vunpack.c.l.b16 %v1144
    %v1247 = vunpack.c.l.b16 %v1145
    %v1248 = vunpack.c.l.b16 %v1146
    %v1249 = vunpack.c.l.b16 %v1147
    %v1250 = vunpack.c.l.b16 %v1148
    %v1251 = vunpack.c.l.b16 %v1149
    %v1252 = vunpack.c.l.b16 %v1150
    %v1253 = vunpack.c.l.b16 %v1151
    %v1254 = vunpack.c.l.b16 %v1152
    %v1255 = vunpack.c.l.b16 %v1153
    %v1256 = vunpack.c.l.b16 %v1154
    %v1257 = vunpack.c.l.b16 %v1155
    %v1258 = vunpack.c.l.b16 %v1156
    %v1259 = vunpack.c.l.b16 %v1157
    %v1260 = vunpack.c.l.b16 %v1158
    %v1261 = vunpack.c.l.b16 %v1159
    %v1262 = vunpack.c.l.b16 %v1160
    %v1263 = vunpack.c.l.b16 %v1161
    %v1264 = vunpack.c.l.b16 %v1162
    %v1265 = vunpack.c.l.b16 %v1163
    %v1266 = vunpack.c.l.b16 %v1164
    %v1267 = vunpack.c.l.b16 %v1165
    %v1268 = vunpack.c.l.b16 %v1166
    %v1269 = vunpack.c.l.b16 %v1167
    %v1270 = vunpack.c.l.b16 %v1168
    %v1271 = vunpack.c.l.b16 %v1169
    %v1272 = vunpack.c.l.b16 %v1170
    %v1273 = vunpack.c.l.b16 %v1171
    %v1274 = vunpack.c.l.b16 %v1172
    %v1275 = vunpack.c.l.b16 %v1173
    %v1276 = vpack.c.b16 %v1229, %v1228
    %v1277 = vpack.c.b16 %v1231, %v1230
    %v1278 = vpack.c.b16 %v1233, %v1232
    %v1279 = vpack.c.b16 %v1235, %v1234
    %v1280 = vpack.c.b16 %v1237, %v1236
    %v1281 = vpack.c.b16 %v1239, %v1238
    %v1282 = vpack.c.b16 %v1241, %v1240
    %v1283 = vpack.c.b16 %v1243, %v1242
    %v1284 = vpack.c.b16 %v1245, %v1244
    %v1285 = vpack.c.b16 %v1247, %v1246
    %v1286 = vpack.c.b16 %v1249, %v1248
    %v1287 = vpack.c.b16 %v1251, %v1250
    %v1288 = vpack.c.b16 %v1253, %v1252
    %v1289 = vpack.c.b16 %v1255, %v1254
    %v1290 = vpack.c.b16 %v1257, %v1256
    %v1291 = vpack.c.b16 %v1259, %v1258
    %v1292 = vpack.c.b16 %v1261, %v1260
    %v1293 = vpack.c.b16 %v1263, %v1262
    %v1294 = vpack.c.b16 %v1265, %v1264
    %v1295 = vpack.c.b16 %v1267, %v1266
    %v1296 = vpack.c.b16 %v1269, %v1268
    %v1297 = vpack.c.b16 %v1271, %v1270
    %v1298 = vpack.c.b16 %v1273, %v1272
    %v1299 = vpack.c.b16 %v1275, %v1274
    %1324 = vmatprep.subr.bf16.mxu0 0
    %1325 = vmatpush1.bf16.msra.mxu0 %v1276
    %1326 = vmatprep.subr.bf16.mxu0 0
    %1327 = vmatpush1.bf16.msra.mxu0 %v1277
    %1328 = vmatprep.subr.bf16.mxu0 0
    %1329 = vmatpush1.bf16.msra.mxu0 %v1278
    %1330 = vmatprep.subr.bf16.mxu0 0
    %1331 = vmatpush1.bf16.msra.mxu0 %v1279
    %1332 = vmatprep.subr.bf16.mxu0 0
    %1333 = vmatpush1.bf16.msra.mxu0 %v1280
    %1334 = vmatprep.subr.bf16.mxu0 0
    %1335 = vmatpush1.bf16.msra.mxu0 %v1281
    %1336 = vmatprep.subr.bf16.mxu0 0
    %1337 = vmatpush1.bf16.msra.mxu0 %v1282
    %1338 = vmatprep.subr.bf16.mxu0 0
    %1339 = vmatpush1.bf16.msra.mxu0 %v1283
    %1340 = vmatprep.subr.bf16.mxu0 0
    %1341 = vmatpush1.bf16.msra.mxu0 %v1284
    %1342 = vmatprep.subr.bf16.mxu0 0
    %1343 = vmatpush1.bf16.msra.mxu0 %v1285
    %1344 = vmatprep.subr.bf16.mxu0 0
    %1345 = vmatpush1.bf16.msra.mxu0 %v1286
    %1346 = vmatprep.subr.bf16.mxu0 0
    %1347 = vmatpush1.bf16.msra.mxu0 %v1287
    %1348 = vmatprep.subr.bf16.mxu0 0
    %1349 = vmatpush1.bf16.msra.mxu0 %v1288
    %1350 = vmatprep.subr.bf16.mxu0 0
    %1351 = vmatpush1.bf16.msra.mxu0 %v1289
    %1352 = vmatprep.subr.bf16.mxu0 0
    %1353 = vmatpush1.bf16.msra.mxu0 %v1290
    %1354 = vmatprep.subr.bf16.mxu0 0
    %1355 = vmatpush1.bf16.msra.mxu0 %v1291
    %1356 = vmatprep.mubr.bf16.mxu0 %v1124
    %1357 = vmatmul.mubr.bf16.gmra.mrb[0].mxu0 %v1123
    %v1358 = vpop.f32.mrb[0].mxu0
    %v1359 = vadd.f32 %v1178, %v1358
    %v1360 = vpop.f32.mrb[0].mxu0
    %v1361 = vpop.f32.mrb[0].mxu0
    %v1362 = vadd.f32 %v1178, %v1361
    %v1363 = vpop.f32.mrb[0].mxu0
    %1364 = vdwg.mxu0
    %1365 = vmatprep.subr.bf16.mxu0 0
    %1366 = vmatpush1.bf16.msra.mxu0 %v1292
    %1367 = vmatprep.subr.bf16.mxu0 0
    %1368 = vmatpush1.bf16.msra.mxu0 %v1293
    %1369 = vmatprep.subr.bf16.mxu0 0
    %1370 = vmatpush1.bf16.msra.mxu0 %v1294
    %1371 = vmatprep.subr.bf16.mxu0 0
    %1372 = vmatpush1.bf16.msra.mxu0 %v1295
    %1373 = vmatprep.subr.bf16.mxu0 0
    %1374 = vmatpush1.bf16.msra.mxu0 %v1296
    %1375 = vmatprep.subr.bf16.mxu0 0
    %1376 = vmatpush1.bf16.msra.mxu0 %v1297
    %1377 = vmatprep.subr.bf16.mxu0 0
    %1378 = vmatpush1.bf16.msra.mxu0 %v1298
    %1379 = vmatprep.subr.bf16.mxu0 0
    %1380 = vmatpush1.bf16.msra.mxu0 %v1299
    %1381 = vmatprep.subr.bf16.mxu0 0
    %1382 = vmatpush1.bf16.msra.mxu0 0
    %1383 = vmatprep.subr.bf16.mxu0 0
    %1384 = vmatpush1.bf16.msra.mxu0 0
    %1385 = vmatprep.subr.bf16.mxu0 0
    %1386 = vmatpush1.bf16.msra.mxu0 0
    %1387 = vmatprep.subr.bf16.mxu0 0
    %1388 = vmatpush1.bf16.msra.mxu0 0
    %1389 = vmatprep.subr.bf16.mxu0 0
    %1390 = vmatpush1.bf16.msra.mxu0 0
    %1391 = vmatprep.subr.bf16.mxu0 0
    %1392 = vmatpush1.bf16.msra.mxu0 0
    %1393 = vmatprep.subr.bf16.mxu0 0
    %1394 = vmatpush1.bf16.msra.mxu0 0
    %1395 = vmatprep.subr.bf16.mxu0 0
    %1396 = vmatpush1.bf16.msra.mxu0 0
    %1397 = vmatprep.mubr.bf16.mxu0 0
    %1398 = vmatmul.mubr.bf16.gmra.mrb[0].mxu0 %v1125
    %v1399 = vpop.f32.mrb[0].mxu0
    %v1400 = vadd.f32 %v1359, %v1399
    %v1401 = vpop.f32.mrb[0].mxu0
    %v1402 = vpop.f32.mrb[0].mxu0
    %v1403 = vadd.f32 %v1362, %v1402
    %v1404 = vpop.f32.mrb[0].mxu0
    %1405 = vdwg.mxu0
    %1406 = vst [vmem:[%s7] sm:$0xff] %v1400
    %1407 = vst [vmem:[%s7 + $0x8] sm:$0xff] %v1403
    // Predicated region
    $region42: #{neural_net_forward.1} parent=1 // pred_check
      _
    $region43: #{neural_net_forward.1} parent=1 // pred_check_branch
      %1409 = sbr.rel (0) target = $region45
    $region44: #{neural_net_forward.1} parent=1 // pred_region
      _
    $region45: #{neural_net_forward.1} parent=1 // pred_fallthru
      _
    // Predicated region
    $region46: #{neural_net_forward.1} parent=1 // pred_check
      _
    $region47: #{neural_net_forward.1} parent=1 // pred_check_branch
      %1411 = sbr.rel (0) target = $region49
    $region48: #{neural_net_forward.1} parent=1 // pred_region
      _
    $region49: #{neural_net_forward.1} parent=1 // pred_fallthru
      _
    %1412 = vsyncpa [#allocation3], 1
    %1413 = vsyncpa [#allocation5], 1

</llo_original>
